<compile_context>
chip_gen: v7x
topology: tpu7x:2x2x1
jax: 0.10.0
libtpu: 0.0.40
codegen_flags: <defaults>
</compile_context>

<pallas_src>
import math

import jax
import jax.numpy as jnp
from jax import lax
from jax.experimental import pallas as pl
from jax.experimental.pallas import tpu as pltpu

KK = 9            # 3x3 kernel taps
NUM_OFF = 2 * KK  # 18 offset channels (deform_groups = 1)

_VMEM_BUDGET = 10 << 20          # conservative in-kernel working set (v5e-safe)
_VMEM_LIMIT = 32 * 1024 * 1024   # explicit scoped-VMEM request (v7x-safe)


def _round_up(x, m):
    return (x + m - 1) // m * m


def _vmem_bytes(HW, TILE, H, W, OC):
    """Rough per-step VMEM estimate (bytes) for one grid step."""
    y_blk = 2 * KK * OC * HW * 4          # y_all block (double-buffered)
    pos_blk = 2 * KK * 2 * TILE * 4       # pos block (double-buffered)
    out_blk = 2 * OC * TILE * 4           # output block (double-buffered)
    m_tmp = 2 * HW * TILE * 4             # one tap's M (+ headroom for dot staging)
    rc_tmp = 4 * (H + W) * TILE * 4       # row/col factors and small temps
    return y_blk + pos_blk + out_blk + m_tmp + rc_tmp


def _pick_tile(HW, HW_pad, H, W, OC, bs):
    tile = None
    for t in (512, 256, 128):
        if HW_pad % t == 0 and _vmem_bytes(HW, t, H, W, OC) <= _VMEM_BUDGET:
            tile = t
            break
    if tile is None:
        # TODO(synk): tile the input-pixel (contraction) axis of M (band-limited
        # gather around each output tile) for detection-scale feature maps.
        raise NotImplementedError(
            f"level ({H}x{W}) needs contraction-axis tiling to fit scoped VMEM")
    # v7x megacore: keep at least 2*cores parallel grid steps so no TC idles.
    while bs * (HW_pad // tile) < 4 and tile > 128:
        tile //= 2
    return tile


def make_branch_level_kernel(H, W, HW, TILE, OC):
    H_f, W_f = float(H), float(W)

    def kernel(y_ref, pos_ref, out_ref):
        # y_ref:   (KK, OC, HW)   per-tap channel contractions  (W_tap @ x)
        # pos_ref: (KK, 2, TILE)  absolute (y, x) sampling positions, this tile
        # out_ref: (OC, TILE)
        row_ids = lax.broadcasted_iota(jnp.int32, (H, TILE), 0).astype(jnp.float32)
        col_ids = lax.broadcasted_iota(jnp.int32, (W, TILE), 0).astype(jnp.float32)

        def tap_body(k, acc):
            pk = pos_ref[k]                     # (2, TILE)
            p_y = pk[0:1, :]                    # (1, TILE)
            p_x = pk[1:2, :]                    # (1, TILE)

            # mmcv deformable_im2col_bilinear semantics.
            valid = (p_y > -1.0) & (p_y < H_f) & (p_x > -1.0) & (p_x < W_f)
            y0 = jnp.floor(p_y)
            x0 = jnp.floor(p_x)
            ly = p_y - y0
            lx = p_x - x0
            hy = 1.0 - ly
            hx = 1.0 - lx

            # Bounds masks separate exactly into row-only / col-only terms.
            wr0 = jnp.where(valid & (y0 >= 0.0), hy, 0.0)        # low row
            wr1 = jnp.where(valid & (y0 <= H_f - 2.0), ly, 0.0)  # high row
            wc0 = jnp.where(x0 >= 0.0, hx, 0.0)                  # low col
            wc1 = jnp.where(x0 <= W_f - 2.0, lx, 0.0)            # high col

            r_fac = (jnp.where(row_ids == y0, wr0, 0.0)
                     + jnp.where(row_ids == y0 + 1.0, wr1, 0.0))   # (H, TILE)
            c_fac = (jnp.where(col_ids == x0, wc0, 0.0)
                     + jnp.where(col_ids == x0 + 1.0, wc1, 0.0))   # (W, TILE)

            # M[r*W + c, t] = r_fac[r, t] * c_fac[c, t] : one mul per element.
            m = (r_fac[:, None, :] * c_fac[None, :, :]).reshape(HW, TILE)

            y_k = y_ref[k]                                         # (OC, HW)
            return acc + jnp.dot(y_k, m, preferred_element_type=jnp.float32)

        acc0 = jnp.zeros((OC, TILE), jnp.float32)
        out_ref[...] = lax.fori_loop(0, KK, tap_body, acc0)

    return kernel


def branch_forward(inputs, spatial_shapes, params):
    """Pallas implementation of Branch.forward.

    inputs: (bs, L, C) float32, L = sum(h*w).
    spatial_shapes: static list of (h, w) Python ints.
    """
    bs, _, C = inputs.shape
    w_off, b_off, w = params["w_off"], params["b_off"], params["w"]
    OC = w.shape[0]
    # (OC, C, 3, 3) -> (3, 3, OC, C) -> (KK, OC, C), tap-major.
    w_taps = jnp.transpose(w, (2, 3, 0, 1)).reshape(KK, OC, C)

    outs = []
    start = 0
    for (H, W) in spatial_shapes:
        HW = H * W
        HW_pad = _round_up(HW, 128)
        TILE = _pick_tile(HW, HW_pad, H, W, OC, bs)
        n_tiles = HW_pad // TILE

        # (bs, HW, C) -> (bs, C, H, W): identical layout to torch's NCHW feat.
        x_nchw = jnp.transpose(
            inputs[:, start:start + HW, :], (0, 2, 1)).reshape(bs, C, H, W)
        start += HW

        # Offset-predicting 3x3 conv (with bias), hoisted out of the kernel.
        off = jax.lax.conv_general_dilated(
            x_nchw, w_off, window_strides=(1, 1), padding=((1, 1), (1, 1)),
            dimension_numbers=("NCHW", "OIHW", "NCHW"))
        off = off + b_off[None, :, None, None]                      # (bs, 18, H, W)

        # Pre-add the fixed sampling grid: tap k -> (y + ky-1 + dy, x + kx-1 + dx).
        yy = jnp.arange(H, dtype=jnp.float32)[:, None]
        xx = jnp.arange(W, dtype=jnp.float32)[None, :]
        base = []
        for k in range(KK):
            ky, kx = k // 3, k % 3
            base.append(jnp.stack(
                [jnp.broadcast_to(yy + float(ky - 1), (H, W)),
                 jnp.broadcast_to(xx + float(kx - 1), (H, W))], axis=0))
        base = jnp.stack(base, axis=0)                               # (KK, 2, H, W)
        pos = (off.reshape(bs, KK, 2, H, W) + base[None]).reshape(bs, KK, 2, HW)

        # Hoisted per-tap channel contraction:
        #   y_all[b, k, oc, p] = sum_c W[oc, c, ky, kx] * x[b, c, p]
        x_flat = x_nchw.reshape(bs, C, HW)
        y_all = jnp.einsum("koc,bcp->bkop", w_taps, x_flat,
                           preferred_element_type=jnp.float32)       # (bs,KK,OC,HW)

        pad = HW_pad - HW
        if pad:
            # Out-of-range sentinel: padded output columns sample nothing.
            pos = jnp.pad(pos, ((0, 0), (0, 0), (0, 0), (0, pad)),
                          constant_values=-10.0)

        kernel = make_branch_level_kernel(H, W, HW, TILE, OC)
        out = pl.pallas_call(
            kernel,
            out_shape=jax.ShapeDtypeStruct((bs, OC, HW_pad), jnp.float32),
            grid_spec=pltpu.PrefetchScalarGridSpec(
                num_scalar_prefetch=0,
                grid=(bs, n_tiles),
                in_specs=[
                    pl.BlockSpec((None, KK, OC, HW), lambda b, t: (b, 0, 0, 0)),
                    pl.BlockSpec((None, KK, 2, TILE), lambda b, t: (b, 0, 0, t)),
                ],
                out_specs=pl.BlockSpec((None, OC, TILE), lambda b, t: (b, 0, t)),
            ),
            compiler_params=pltpu.CompilerParams(
                dimension_semantics=("parallel", "parallel"),
                vmem_limit_bytes=_VMEM_LIMIT),
        )(y_all, pos)

        outs.append(jnp.transpose(out[:, :, :HW], (0, 2, 1)))        # (bs, HW, OC)
    return jnp.concatenate(outs, axis=1)                             # (bs, L, OC)


# ---------------- pure-JAX reference (independent gather-based path) ----------
def branch_forward_ref(inputs, spatial_shapes, params):
    bs, _, C = inputs.shape
    w_off, b_off, w = params["w_off"], params["b_off"], params["w"]
    OC = w.shape[0]
    outs = []
    start = 0
    for (H, W) in spatial_shapes:
        HW = H * W
        x = jnp.transpose(inputs[:, start:start + HW, :], (0, 2, 1)).reshape(bs, C, H, W)
        start += HW
        off = jax.lax.conv_general_dilated(
            x, w_off, window_strides=(1, 1), padding=((1, 1), (1, 1)),
            dimension_numbers=("NCHW", "OIHW", "NCHW")) + b_off[None, :, None, None]
        yy = jnp.arange(H, dtype=jnp.float32)[:, None]
        xx = jnp.arange(W, dtype=jnp.float32)[None, :]
        out = jnp.zeros((bs, OC, H, W), jnp.float32)
        for k in range(KK):
            ky, kx = k // 3, k % 3
            py = yy[None] + float(ky - 1) + off[:, 2 * k]
            px = xx[None] + float(kx - 1) + off[:, 2 * k + 1]
            valid = (py > -1) & (py < H) & (px > -1) & (px < W)
            y0 = jnp.floor(py)
            x0 = jnp.floor(px)
            ly, lx = py - y0, px - x0
            hy, hx = 1.0 - ly, 1.0 - lx
            y0i = y0.astype(jnp.int32)
            x0i = x0.astype(jnp.int32)

            def gather(cy, cx):
                inb = (cy >= 0) & (cy <= H - 1) & (cx >= 0) & (cx <= W - 1)
                cyc = jnp.clip(cy, 0, H - 1)
                cxc = jnp.clip(cx, 0, W - 1)
                bi = jnp.arange(bs)[:, None, None, None]
                ci = jnp.arange(C)[None, :, None, None]
                v = x[bi, ci, cyc[:, None], cxc[:, None]]
                return jnp.where(inb[:, None], v, 0.0)

            sampled = ((hy * hx)[:, None] * gather(y0i, x0i)
                       + (hy * lx)[:, None] * gather(y0i, x0i + 1)
                       + (ly * hx)[:, None] * gather(y0i + 1, x0i)
                       + (ly * lx)[:, None] * gather(y0i + 1, x0i + 1))
            sampled = jnp.where(valid[:, None], sampled, 0.0)
            out = out + jnp.einsum("oc,bchw->bohw", w[:, :, ky, kx], sampled)
        outs.append(jnp.transpose(out.reshape(bs, OC, HW), (0, 2, 1)))
    return jnp.concatenate(outs, axis=1)


if __name__ == "__main__":
    bs, embed_dims, out_channels = 2, 8, 4
    spatial_shapes = [(16, 16), (8, 8)]
    L = sum(h * w for h, w in spatial_shapes)

    key = jax.random.PRNGKey(0)
    k1, k2, k3, k4 = jax.random.split(key, 4)
    params = {
        # deformable-conv weight (no bias in mmcv's DeformConv2d)
        "w": jax.random.normal(k1, (out_channels, embed_dims, 3, 3),
                               jnp.float32) / math.sqrt(embed_dims * 9),
        # mmcv's DeformConv2dPack zero-inits conv_offset; use small random
        # values here so the bilinear-sampling path is actually exercised.
        "w_off": jax.random.normal(k2, (NUM_OFF, embed_dims, 3, 3),
                                   jnp.float32) * 0.05,
        "b_off": jax.random.normal(k3, (NUM_OFF,), jnp.float32) * 0.05,
    }
    inputs = jax.random.normal(k4, (bs, L, embed_dims), jnp.float32)

    out = jax.block_until_ready(branch_forward(inputs, spatial_shapes, params))
    ref = jax.block_until_ready(branch_forward_ref(inputs, spatial_shapes, params))

    assert out.shape == (bs, L, out_channels), out.shape
    max_err = float(jnp.max(jnp.abs(out - ref)))
    assert max_err < 1e-3, f"mismatch vs reference: {max_err}"
    print("KERNEL_OK")
</pallas_src>

<mosaic_0001>
module attributes {stable_mosaic.version = 11 : i64} {
  func.func @kernel(%arg0: i32, %arg1: i32, %arg2: memref<1x9x4x256xf32, #tpu.memory_space<vmem>>, %arg3: memref<1x9x2x128xf32, #tpu.memory_space<vmem>>, %arg4: memref<1x4x128xf32, #tpu.memory_space<vmem>>) attributes {dimension_semantics = [#tpu.dimension_semantics<parallel>, #tpu.dimension_semantics<parallel>], iteration_bounds = array<i64: 2, 2>, scalar_prefetch = 0 : i64, scratch_operands = 0 : i64, tpu.core_type = #tpu.core_type<tc>, window_params = [{transform_indices = @transform_0, window_bounds = array<i64: 1, 9, 4, 256>}, {transform_indices = @transform_1, window_bounds = array<i64: 1, 9, 2, 128>}, {transform_indices = @transform_2, window_bounds = array<i64: 1, 4, 128>}]} {
    %0 = tpu.iota {dimensions = array<i32: 0>} : vector<16x128xi32>
    %1 = arith.sitofp %0 : vector<16x128xi32> to vector<16x128xf32>
    %2 = tpu.iota {dimensions = array<i32: 0>} : vector<16x128xi32>
    %3 = arith.sitofp %2 : vector<16x128xi32> to vector<16x128xf32>
    %cst = arith.constant 0.000000e+00 : f32
    %4 = vector.broadcast %cst : f32 to vector<4x128xf32>
    %c0_i32 = arith.constant 0 : i32
    %c9_i32 = arith.constant 9 : i32
    %5 = arith.addi %c0_i32, %c9_i32 : i32
    %c1_i32 = arith.constant 1 : i32
    %6 = scf.for %arg5 = %c0_i32 to %5 step %c1_i32 iter_args(%arg6 = %4) -> (vector<4x128xf32>)  : i32 {
      %c0_3 = arith.constant 0 : index
      %10 = arith.index_cast %arg5 : i32 to index
      %c0_4 = arith.constant 0 : index
      %c0_5 = arith.constant 0 : index
      %11 = vector.load %arg3[%c0_3, %10, %c0_4, %c0_5] : memref<1x9x2x128xf32, #tpu.memory_space<vmem>>, vector<1x1x2x128xf32>
      %12 = vector.shape_cast %11 : vector<1x1x2x128xf32> to vector<2x128xf32>
      %13 = vector.extract_strided_slice %12 {offsets = [0, 0], sizes = [1, 128], strides = [1, 1]} : vector<2x128xf32> to vector<1x128xf32>
      %14 = vector.extract_strided_slice %12 {offsets = [1, 0], sizes = [1, 128], strides = [1, 1]} : vector<2x128xf32> to vector<1x128xf32>
      %cst_6 = arith.constant -1.000000e+00 : f32
      %15 = vector.broadcast %cst_6 : f32 to vector<1x128xf32>
      %16 = arith.cmpf ogt, %13, %15 : vector<1x128xf32>
      %cst_7 = arith.constant 1.600000e+01 : f32
      %17 = vector.broadcast %cst_7 : f32 to vector<1x128xf32>
      %18 = arith.cmpf olt, %13, %17 : vector<1x128xf32>
      %19 = arith.andi %16, %18 : vector<1x128xi1>
      %cst_8 = arith.constant -1.000000e+00 : f32
      %20 = vector.broadcast %cst_8 : f32 to vector<1x128xf32>
      %21 = arith.cmpf ogt, %14, %20 : vector<1x128xf32>
      %22 = arith.andi %19, %21 : vector<1x128xi1>
      %cst_9 = arith.constant 1.600000e+01 : f32
      %23 = vector.broadcast %cst_9 : f32 to vector<1x128xf32>
      %24 = arith.cmpf olt, %14, %23 : vector<1x128xf32>
      %25 = arith.andi %22, %24 : vector<1x128xi1>
      %26 = math.floor %13 : vector<1x128xf32>
      %27 = math.floor %14 : vector<1x128xf32>
      %28 = arith.subf %13, %26 : vector<1x128xf32>
      %29 = arith.subf %14, %27 : vector<1x128xf32>
      %cst_10 = arith.constant 1.000000e+00 : f32
      %30 = vector.broadcast %cst_10 : f32 to vector<1x128xf32>
      %31 = arith.subf %30, %28 : vector<1x128xf32>
      %cst_11 = arith.constant 1.000000e+00 : f32
      %32 = vector.broadcast %cst_11 : f32 to vector<1x128xf32>
      %33 = arith.subf %32, %29 : vector<1x128xf32>
      %cst_12 = arith.constant 0.000000e+00 : f32
      %34 = vector.broadcast %cst_12 : f32 to vector<1x128xf32>
      %35 = arith.cmpf oge, %26, %34 : vector<1x128xf32>
      %36 = arith.andi %25, %35 : vector<1x128xi1>
      %cst_13 = arith.constant 0.000000e+00 : f32
      %37 = vector.broadcast %cst_13 : f32 to vector<1x128xf32>
      %38 = arith.select %36, %31, %37 : vector<1x128xi1>, vector<1x128xf32>
      %cst_14 = arith.constant 1.400000e+01 : f32
      %39 = vector.broadcast %cst_14 : f32 to vector<1x128xf32>
      %40 = arith.cmpf ole, %26, %39 : vector<1x128xf32>
      %41 = arith.andi %25, %40 : vector<1x128xi1>
      %cst_15 = arith.constant 0.000000e+00 : f32
      %42 = vector.broadcast %cst_15 : f32 to vector<1x128xf32>
      %43 = arith.select %41, %28, %42 : vector<1x128xi1>, vector<1x128xf32>
      %cst_16 = arith.constant 0.000000e+00 : f32
      %44 = vector.broadcast %cst_16 : f32 to vector<1x128xf32>
      %45 = arith.cmpf oge, %27, %44 : vector<1x128xf32>
      %cst_17 = arith.constant 0.000000e+00 : f32
      %46 = vector.broadcast %cst_17 : f32 to vector<1x128xf32>
      %47 = arith.select %45, %33, %46 : vector<1x128xi1>, vector<1x128xf32>
      %cst_18 = arith.constant 1.400000e+01 : f32
      %48 = vector.broadcast %cst_18 : f32 to vector<1x128xf32>
      %49 = arith.cmpf ole, %27, %48 : vector<1x128xf32>
      %cst_19 = arith.constant 0.000000e+00 : f32
      %50 = vector.broadcast %cst_19 : f32 to vector<1x128xf32>
      %51 = arith.select %49, %29, %50 : vector<1x128xi1>, vector<1x128xf32>
      %52 = vector.broadcast %26 : vector<1x128xf32> to vector<16x128xf32>
      %53 = arith.cmpf oeq, %1, %52 : vector<16x128xf32>
      %cst_20 = arith.constant 0.000000e+00 : f32
      %54 = vector.shape_cast %38 : vector<1x128xf32> to vector<1x128xf32>
      %55 = vector.broadcast %54 : vector<1x128xf32> to vector<16x128xf32>
      %56 = vector.broadcast %cst_20 : f32 to vector<16x128xf32>
      %57 = arith.select %53, %55, %56 : vector<16x128xi1>, vector<16x128xf32>
      %cst_21 = arith.constant 1.000000e+00 : f32
      %58 = vector.broadcast %cst_21 : f32 to vector<1x128xf32>
      %59 = arith.addf %26, %58 : vector<1x128xf32>
      %60 = vector.broadcast %59 : vector<1x128xf32> to vector<16x128xf32>
      %61 = arith.cmpf oeq, %1, %60 : vector<16x128xf32>
      %cst_22 = arith.constant 0.000000e+00 : f32
      %62 = vector.shape_cast %43 : vector<1x128xf32> to vector<1x128xf32>
      %63 = vector.broadcast %62 : vector<1x128xf32> to vector<16x128xf32>
      %64 = vector.broadcast %cst_22 : f32 to vector<16x128xf32>
      %65 = arith.select %61, %63, %64 : vector<16x128xi1>, vector<16x128xf32>
      %66 = arith.addf %57, %65 : vector<16x128xf32>
      %67 = vector.broadcast %27 : vector<1x128xf32> to vector<16x128xf32>
      %68 = arith.cmpf oeq, %3, %67 : vector<16x128xf32>
      %cst_23 = arith.constant 0.000000e+00 : f32
      %69 = vector.shape_cast %47 : vector<1x128xf32> to vector<1x128xf32>
      %70 = vector.broadcast %69 : vector<1x128xf32> to vector<16x128xf32>
      %71 = vector.broadcast %cst_23 : f32 to vector<16x128xf32>
      %72 = arith.select %68, %70, %71 : vector<16x128xi1>, vector<16x128xf32>
      %cst_24 = arith.constant 1.000000e+00 : f32
      %73 = vector.broadcast %cst_24 : f32 to vector<1x128xf32>
      %74 = arith.addf %27, %73 : vector<1x128xf32>
      %75 = vector.broadcast %74 : vector<1x128xf32> to vector<16x128xf32>
      %76 = arith.cmpf oeq, %3, %75 : vector<16x128xf32>
      %cst_25 = arith.constant 0.000000e+00 : f32
      %77 = vector.shape_cast %51 : vector<1x128xf32> to vector<1x128xf32>
      %78 = vector.broadcast %77 : vector<1x128xf32> to vector<16x128xf32>
      %79 = vector.broadcast %cst_25 : f32 to vector<16x128xf32>
      %80 = arith.select %76, %78, %79 : vector<16x128xi1>, vector<16x128xf32>
      %81 = arith.addf %72, %80 : vector<16x128xf32>
      %82 = vector.shape_cast %66 : vector<16x128xf32> to vector<16x1x128xf32>
      %83 = vector.shape_cast %81 : vector<16x128xf32> to vector<1x16x128xf32>
      %84 = vector.broadcast %82 : vector<16x1x128xf32> to vector<16x16x128xf32>
      %85 = vector.broadcast %83 : vector<1x16x128xf32> to vector<16x16x128xf32>
      %86 = arith.mulf %84, %85 : vector<16x16x128xf32>
      %87 = vector.shape_cast %86 : vector<16x16x128xf32> to vector<256x128xf32>
      %c0_26 = arith.constant 0 : index
      %88 = arith.index_cast %arg5 : i32 to index
      %c0_27 = arith.constant 0 : index
      %c0_28 = arith.constant 0 : index
      %89 = vector.load %arg2[%c0_26, %88, %c0_27, %c0_28] : memref<1x9x4x256xf32, #tpu.memory_space<vmem>>, vector<1x1x4x256xf32>
      %90 = vector.shape_cast %89 : vector<1x1x4x256xf32> to vector<4x256xf32>
      %cst_29 = arith.constant dense<0.000000e+00> : vector<4x128xf32>
      %91 = tpu.matmul %90, %87, %cst_29 {dimension_numbers = #tpu.dot_dimension_numbers<[1], [0], [0], [1], [0, 0, 1, 1], [], []>} : vector<4x256xf32>, vector<256x128xf32>, vector<4x128xf32> -> vector<4x128xf32>
      %92 = arith.addf %arg6, %91 : vector<4x128xf32>
      scf.yield %92 : vector<4x128xf32>
    }
    %c9_i32_0 = arith.constant 9 : i32
    %c0 = arith.constant 0 : index
    %c0_1 = arith.constant 0 : index
    %c0_2 = arith.constant 0 : index
    %7 = vector.load %arg4[%c0, %c0_1, %c0_2] : memref<1x4x128xf32, #tpu.memory_space<vmem>>, vector<1x4x128xf32>
    %8 = vector.shape_cast %7 : vector<1x4x128xf32> to vector<4x128xf32>
    %9 = vector.shape_cast %6 : vector<4x128xf32> to vector<1x4x128xf32>
    tpu.vector_store %arg4[%c0, %c0_1, %c0_2], %9 {strides = array<i32>} : memref<1x4x128xf32, #tpu.memory_space<vmem>>, vector<1x4x128xf32>,
    return
  }
  func.func @transform_0(%arg0: i32, %arg1: i32) -> (i32, i32, i32, i32) {
    %c0_i32 = arith.constant 0 : i32
    %c0_i32_0 = arith.constant 0 : i32
    %c0_i32_1 = arith.constant 0 : i32
    %c0_i32_2 = arith.constant 0 : i32
    return %arg0, %c0_i32, %c0_i32_0, %c0_i32_1 : i32, i32, i32, i32
  }
  func.func @transform_1(%arg0: i32, %arg1: i32) -> (i32, i32, i32, i32) {
    %c0_i32 = arith.constant 0 : i32
    %c0_i32_0 = arith.constant 0 : i32
    %c0_i32_1 = arith.constant 0 : i32
    return %arg0, %c0_i32, %c0_i32_0, %arg1 : i32, i32, i32, i32
  }
  func.func @transform_2(%arg0: i32, %arg1: i32) -> (i32, i32, i32) {
    %c0_i32 = arith.constant 0 : i32
    %c0_i32_0 = arith.constant 0 : i32
    return %arg0, %c0_i32, %arg1 : i32, i32, i32
  }
}

</mosaic_0001>

<llo_original>
// kernel: tpu_custom_call.1
$region0: #{tpu_custom_call.1}
  #allocation0 [shape = 'u32[]', space=smem, size = 0x4, offset = 0x4, fixed_abs, tag = 'smem constant byte address 0x4 - core index']
  #allocation1 [shape = 'u32[144,128]{1,0:T(1,128)}', space=vmem, size = 0x12000, scoped, tag = 'internal scratch']
  %s0 = inlined_call_operand.hbm [shape: f32[2,9,4,256], index: 0, kind: input, shape index: {}]
  %s1 = inlined_call_operand.hbm [shape: f32[2,9,2,256], index: 1, kind: input, shape index: {}]
  %s2 = inlined_call_operand.hbm [shape: f32[2,4,256], index: 2, kind: output, shape index: {}]
  %s3 = sld [smem:[#allocation0]]
  $region56: #{tpu_custom_call.1} parent=0
    _
  %s5 = ssub.s32 1, %s3
  %s6 = scalar_select 0, %s5, %s3
  $region1: #{tpu_custom_call.1} parent=0
    #allocation2 [shape = 'u8[73728]{0}', space=vmem, size = 0x12000, scoped, tag = 'input window, operand 0']
    #allocation3 [shape = 's32[2]{0}', space=sflag, size = 0x8, scoped, tag = 'scoped memory for tpu_custom_call.1']
    #allocation4 [shape = 's32[2]{0}', space=sflag, size = 0x8, scoped, tag = 'scoped memory for tpu_custom_call.1']
    #allocation5 [shape = 'u8[18432]{0}', space=vmem, size = 0x4800, scoped, tag = 'input window, operand 1']
    #allocation6 [shape = 's32[2]{0}', space=sflag, size = 0x8, scoped, tag = 'scoped memory for tpu_custom_call.1']
    #allocation7 [shape = 'u8[4096]{0}', space=vmem, size = 0x1000, scoped, tag = 'output window, operand 0']
    %7 = vsyncpa [#allocation3], 0
    %s8 = scalar_lea.sflag [#allocation3], 1
    %9 = vsyncpa %s8, 0
    %10 = vsyncpa [#allocation6], 0
    %s11 = scalar_lea.sflag [#allocation6], 1
    %12 = vsyncpa %s11, 0
    %13 = vsyncpa [#allocation4], 0
    %s14 = scalar_lea.sflag [#allocation4], 1
    %15 = vsyncpa %s14, 0
    loop: start=0, step=1, limit=6
    $region2: #{tpu_custom_call.1} parent=1 // loop_pre_header
      _
    $region3: #{tpu_custom_call.1} parent=1 // loop_header
      %s17 = sphi 0, %s21
      %p18 = scmp.ge.s32.totalorder %s17, 6
      %s24 = sphi 0, %s36
      %s25 = sphi 0, %s32
      %s26 = sphi 0, %s24
      %s27 = sphi 0, %s25
      %s28 = sphi 0, %s26
      %s29 = sphi 0, %s27
      %s39 = sphi 0, %s41
      %s42 = sphi 0, %s39
      %s43 = sphi 0, %s42
      %s59 = sphi 0, %s43
      %s67 = sphi 0, %s69
      %s70 = sphi 0, %s67
      %s71 = sphi 0, %s70
      %s87 = sphi 0, %s71
      %s95 = sphi 0, %s97
      %s98 = sphi 0, %s95
      %s99 = sphi 0, %s98
      %s115 = sphi 0, %s99
    $region4: #{tpu_custom_call.1} parent=1 // loop_header_branch
      %20 = sbr.rel (%p18) target = $region8
    $region5: #{tpu_custom_call.1} parent=1 // loop_body
      %s22 = ssub.s32 %s17, 1
      %s23 = ssub.s32 %s17, 2
      %s30 = sadd.s32 1, %s25
      %p31 = scmp.ge.s32.totalorder %s30, 2
      %s32 = scalar_select %p31, 0, %s30
      %s33 = sadd.s32 1, %s24
      %s34 = scalar_select %p31, %s33, %s24
      %p35 = scmp.ge.s32.totalorder %s34, 2
      %s36 = scalar_select %p35, 0, %s34
      %s37 = ssub.s32 %s24, %s36
      %p38 = scmp.eq.s32.totalorder %s37, 0
      %s40 = sadd.s32 %s39, 1
      %s41 = scalar_select %p38, %s39, %s40
      %p44 = pneg %p38
      %p45 = scmp.eq.s32.totalorder %s17, 3
      %p46 = por %p44, %p45
      %p47 = scmp.ne.s32.totalorder %s39, %s42
      %p48 = scmp.eq.s32.totalorder %s17, 0
      %p49 = por %p47, %p48
      %p50 = scmp.ne.s32.totalorder %s39, %s42
      %p51 = scmp.eq.s32.totalorder %s22, 3
      %p52 = por %p50, %p51
      %p53 = scmp.ne.s32.totalorder %s42, %s43
      %p54 = scmp.eq.s32.totalorder %s22, 0
      %p55 = por %p53, %p54
      %p56 = scmp.ne.s32.totalorder %s42, %s43
      %p57 = scmp.eq.s32.totalorder %s23, 3
      %p58 = por %p56, %p57
      %p60 = scmp.ne.s32.totalorder %s43, %s59
      %p61 = scmp.eq.s32.totalorder %s23, 0
      %p62 = por %p60, %p61
      %s63 = ssub.s32 %s24, %s36
      %s64 = ssub.s32 %s25, %s32
      %s65 = sor.u32 %s63, %s64
      %p66 = scmp.eq.s32.totalorder %s65, 0
      %s68 = sadd.s32 %s67, 1
      %s69 = scalar_select %p66, %s67, %s68
      %p72 = pneg %p66
      %p73 = scmp.eq.s32.totalorder %s17, 3
      %p74 = por %p72, %p73
      %p75 = scmp.ne.s32.totalorder %s67, %s70
      %p76 = scmp.eq.s32.totalorder %s17, 0
      %p77 = por %p75, %p76
      %p78 = scmp.ne.s32.totalorder %s67, %s70
      %p79 = scmp.eq.s32.totalorder %s22, 3
      %p80 = por %p78, %p79
      %p81 = scmp.ne.s32.totalorder %s70, %s71
      %p82 = scmp.eq.s32.totalorder %s22, 0
      %p83 = por %p81, %p82
      %p84 = scmp.ne.s32.totalorder %s70, %s71
      %p85 = scmp.eq.s32.totalorder %s23, 3
      %p86 = por %p84, %p85
      %p88 = scmp.ne.s32.totalorder %s71, %s87
      %p89 = scmp.eq.s32.totalorder %s23, 0
      %p90 = por %p88, %p89
      %s91 = ssub.s32 %s24, %s36
      %s92 = ssub.s32 %s25, %s32
      %s93 = sor.u32 %s91, %s92
      %p94 = scmp.eq.s32.totalorder %s93, 0
      %s96 = sadd.s32 %s95, 1
      %s97 = scalar_select %p94, %s95, %s96
      %p100 = pneg %p94
      %p101 = scmp.eq.s32.totalorder %s17, 3
      %p102 = por %p100, %p101
      %p103 = scmp.ne.s32.totalorder %s95, %s98
      %p104 = scmp.eq.s32.totalorder %s17, 0
      %p105 = por %p103, %p104
      %p106 = scmp.ne.s32.totalorder %s95, %s98
      %p107 = scmp.eq.s32.totalorder %s22, 3
      %p108 = por %p106, %p107
      %p109 = scmp.ne.s32.totalorder %s98, %s99
      %p110 = scmp.eq.s32.totalorder %s22, 0
      %p111 = por %p109, %p110
      %p112 = scmp.ne.s32.totalorder %s98, %s99
      %p113 = scmp.eq.s32.totalorder %s23, 3
      %p114 = por %p112, %p113
      %p116 = scmp.ne.s32.totalorder %s99, %s115
      %p117 = scmp.eq.s32.totalorder %s23, 0
      %p118 = por %p116, %p117
      %p119 = scmp.le.s32.totalorder 1, %s17
      %p120 = scmp.lt.s32.totalorder %s17, 5
      %p121 = pnand %p119, %p120
      %p122 = pneg %p121
      // Predicated region
      $region9: #{tpu_custom_call.1} parent=5 // pred_check
        _
      $region10: #{tpu_custom_call.1} parent=5 // pred_check_branch
        %124 = sbr.rel (%p121) target = $region12
      $region11: #{tpu_custom_call.1} parent=5 // pred_region
        %s125 = ssub.s32 %s17, 1
      $region12: #{tpu_custom_call.1} parent=5 // pred_fallthru
        _
      %p126 = scmp.lt.s32.totalorder %s17, 4
      // Predicated region
      $region13: #{tpu_custom_call.1} parent=5 // pred_check
        %p127 = pneg %p126
      $region14: #{tpu_custom_call.1} parent=5 // pred_check_branch
        %129 = sbr.rel (%p127) target = $region16
      $region15: #{tpu_custom_call.1} parent=5 // pred_region
        // Predicated region
        $region17: #{tpu_custom_call.1} parent=15 // pred_check
          %p130 = pneg %p49
        $region18: #{tpu_custom_call.1} parent=15 // pred_check_branch
          %132 = sbr.rel (%p130) target = $region20
        $region19: #{tpu_custom_call.1} parent=15 // pred_region
          %s133 = sand.u32 %s39, 1
          %s134 = scalar_lea.sflag [#allocation3], %s133
          %s135 = sand.u32 %s39, 1
          %s136 = smul.addr %s135, 72
          %s137 = scalar_lea.vmem [#allocation2], %s136
          %s139 = ssub.s32 1152, 1152
          %140 = vsyncadd %s134, %s139
          %s141 = smul.addr %s24, 18
          %s142 = smul.addr %s141, 64
          %s143 = scalar_lea.hbm %s0, %s142
          %s144 = sshll.u32 %s137, 4
          %s145 = int_to_ptr.vmem [resolvable:$true] %s144
          %150 = dma.hbm_to_vmem [thread:$0]  %s143, 1152, %s145, %s134, 128, 128, 8
        $region20: #{tpu_custom_call.1} parent=15 // pred_fallthru
          _
        // Predicated region
        $region21: #{tpu_custom_call.1} parent=15 // pred_check
          %p151 = pneg %p77
        $region22: #{tpu_custom_call.1} parent=15 // pred_check_branch
          %153 = sbr.rel (%p151) target = $region24
        $region23: #{tpu_custom_call.1} parent=15 // pred_region
          %s154 = sand.u32 %s67, 1
          %s155 = scalar_lea.sflag [#allocation6], %s154
          %s156 = sand.u32 %s67, 1
          %s157 = smul.addr %s156, 18
          %s158 = scalar_lea.vmem [#allocation5], %s157
          %s160 = ssub.s32 288, 288
          %161 = vsyncadd %s155, %s160
          %s162 = smul.addr %s24, 18
          %s163 = sadd.s32 %s25, %s162
          %s164 = smul.addr %s163, 32
          %s165 = scalar_lea.hbm %s1, %s164
          %s166 = sshll.u32 %s158, 4
          %s167 = int_to_ptr.vmem [resolvable:$true] %s166
          %172 = dma.hbm_to_vmem [thread:$0]  %s165, 288, %s167, %s155, 64, 32, 2
        $region24: #{tpu_custom_call.1} parent=15 // pred_fallthru
          _
      $region16: #{tpu_custom_call.1} parent=5 // pred_fallthru
        _
      %p173 = scmp.le.s32.totalorder 1, %s17
      %p174 = scmp.lt.s32.totalorder %s17, 5
      %p175 = pnand %p173, %p174
      %p176 = pneg %p175
      // Predicated region
      $region25: #{tpu_custom_call.1} parent=5 // pred_check
        _
      $region26: #{tpu_custom_call.1} parent=5 // pred_check_branch
        %178 = sbr.rel (%p175) target = $region28
      $region27: #{tpu_custom_call.1} parent=5 // pred_region
        %s179 = ssub.s32 %s17, 1
        %s180 = sand.u32 %s42, 1
        %s181 = scalar_lea.sflag [#allocation3], %s180
        %s182 = sand.u32 %s42, 1
        %s183 = smul.addr %s182, 72
        %s184 = scalar_lea.vmem [#allocation2], %s183
        // Predicated region
        $region29: #{tpu_custom_call.1} parent=27 // pred_check
          %p185 = pneg %p55
        $region30: #{tpu_custom_call.1} parent=27 // pred_check_branch
          %187 = sbr.rel (%p185) target = $region32
        $region31: #{tpu_custom_call.1} parent=27 // pred_region
          %188 = dma.done %s181, 1152
        $region32: #{tpu_custom_call.1} parent=27 // pred_fallthru
          _
        %s189 = sand.u32 %s70, 1
        %s190 = scalar_lea.sflag [#allocation6], %s189
        %s191 = sand.u32 %s70, 1
        %s192 = smul.addr %s191, 18
        %s193 = scalar_lea.vmem [#allocation5], %s192
        // Predicated region
        $region33: #{tpu_custom_call.1} parent=27 // pred_check
          %p194 = pneg %p83
        $region34: #{tpu_custom_call.1} parent=27 // pred_check_branch
          %196 = sbr.rel (%p194) target = $region36
        $region35: #{tpu_custom_call.1} parent=27 // pred_region
          %197 = dma.done %s190, 288
        $region36: #{tpu_custom_call.1} parent=27 // pred_fallthru
          _
        %s198 = sand.u32 %s42, 1
        %s199 = scalar_lea.sflag [#allocation3], %s198
        %s200 = sand.u32 %s42, 1
        %s201 = smul.addr %s200, 72
        %s202 = scalar_lea.vmem [#allocation2], %s201
        %p203 = pneg %p55
        %p204 = pneg %p52
        %s205 = sand.u32 %s70, 1
        %s206 = scalar_lea.sflag [#allocation6], %s205
        %s207 = sand.u32 %s70, 1
        %s208 = smul.addr %s207, 18
        %s209 = scalar_lea.vmem [#allocation5], %s208
        %p210 = pneg %p83
        %p211 = pneg %p80
        %p212 = pneg %p111
        %p213 = pneg %p108
        %s214 = sand.u32 %s98, 1
        %s215 = scalar_lea.sflag [#allocation4], %s214
        %s216 = sand.u32 %s98, 1
        %s217 = smul.addr %s216, 4
        %s218 = scalar_lea.vmem [#allocation7], %s217
        %v219 = vlaneseq
        %v220 = vshrl.u32 %v219, 7
        %v221 = vadd.s32 %v220, 8
        %v222 = vcvt.s32.f32 %v220
        %v223 = vcvt.s32.f32 %v221
        loop: start=0, step=1, limit=9
        $region37: #{tpu_custom_call.1} parent=27 // loop_pre_header
          _
        $region38: #{tpu_custom_call.1} parent=27 // loop_header
          %s225 = sphi 0, %s229
          %p226 = scmp.ge.s32.totalorder %s225, 9
          %v230 = vphi 0.0, %v597
        $region39: #{tpu_custom_call.1} parent=27 // loop_header_branch
          %228 = sbr.rel (%p226) target = $region43
        $region40: #{tpu_custom_call.1} parent=27 // loop_body
          %s231 = smul.u32 %s225, 2
          %s232 = scalar_lea.vmem %s193, %s231 [#allocation5]
          %v233 = vld [vmem:[%s232] sm:$0x3]
          %vm234 = vcmp.gt.f32.partialorder %v233, -1.0
          %vm235 = vcmp.lt.f32.partialorder %v233, 16.0
          %vm236 = vmand %vm234, %vm235
          %v237 = vsel %vm234, 1, 0
          %v238 = vrot.slane %v237, 1
          %vm239 = vcmp.ne.s32.totalorder %v238, 0
          %vm240 = vmand %vm236, %vm239
          %v241 = vsel %vm235, 1, 0
          %v242 = vrot.slane %v241, 1
          %vm243 = vcmp.ne.s32.totalorder %v242, 0
          %vm244 = vmand %vm240, %vm243
          %v245 = vfloor.f32 %v233
          %v246 = vsub.f32 %v233, %v245
          %v247 = vsub.f32 1.0, %v246
          %vm248 = vcmp.ge.f32.partialorder %v245, 0.0
          %vm249 = vmand %vm244, %vm248
          %v250 = vsel %vm249, %v247, 0.0
          %vm251 = vcmp.le.f32.partialorder %v245, 14.0
          %vm252 = vmand %vm244, %vm251
          %v253 = vsel %vm252, %v246, 0.0
          %v254 = vsel %vm248, %v247, 0.0
          %v255 = vsel %vm251, %v246, 0.0
          %v256 = vlaneseq
          %v257 = vshrl.u32 %v256, 7
          %v258 = vsub.s32 0, %v257
          %v259 = vrot.slane %v245, %v258
          %vm260 = vcmp.eq.f32.partialorder %v222, %v259
          %vm261 = vcmp.eq.f32.partialorder %v223, %v259
          %v262 = vlaneseq
          %v263 = vshrl.u32 %v262, 7
          %v264 = vsub.s32 0, %v263
          %v265 = vrot.slane %v250, %v264
          %v266 = vsel %vm260, %v265, 0.0
          %v267 = vsel %vm261, %v265, 0.0
          %v268 = vadd.f32 %v245, 1.0
          %v269 = vlaneseq
          %v270 = vshrl.u32 %v269, 7
          %v271 = vsub.s32 0, %v270
          %v272 = vrot.slane %v268, %v271
          %vm273 = vcmp.eq.f32.partialorder %v222, %v272
          %vm274 = vcmp.eq.f32.partialorder %v223, %v272
          %v275 = vlaneseq
          %v276 = vshrl.u32 %v275, 7
          %v277 = vsub.s32 0, %v276
          %v278 = vrot.slane %v253, %v277
          %v279 = vsel %vm273, %v278, 0.0
          %v280 = vsel %vm274, %v278, 0.0
          %v281 = vadd.f32 %v266, %v279
          %v282 = vadd.f32 %v267, %v280
          %v283 = vlaneseq
          %v284 = vshrl.u32 %v283, 7
          %v285 = vsub.s32 1, %v284
          %v286 = vrot.slane %v245, %v285
          %vm287 = vcmp.eq.f32.partialorder %v222, %v286
          %vm288 = vcmp.eq.f32.partialorder %v223, %v286
          %v289 = vlaneseq
          %v290 = vshrl.u32 %v289, 7
          %v291 = vsub.s32 1, %v290
          %v292 = vrot.slane %v254, %v291
          %v293 = vsel %vm287, %v292, 0.0
          %v294 = vsel %vm288, %v292, 0.0
          %v295 = vlaneseq
          %v296 = vshrl.u32 %v295, 7
          %v297 = vsub.s32 1, %v296
          %v298 = vrot.slane %v268, %v297
          %vm299 = vcmp.eq.f32.partialorder %v222, %v298
          %vm300 = vcmp.eq.f32.partialorder %v223, %v298
          %v301 = vlaneseq
          %v302 = vshrl.u32 %v301, 7
          %v303 = vsub.s32 1, %v302
          %v304 = vrot.slane %v255, %v303
          %v305 = vsel %vm299, %v304, 0.0
          %v306 = vsel %vm300, %v304, 0.0
          %v307 = vadd.f32 %v293, %v305
          %v308 = vadd.f32 %v294, %v306
          %v311 = vcombine.high %v281, %v281
          %v313 = vunpack.c.l.s4 1966171168
          %v314 = vunpack.c.0.s8 %v313
          %v315 = vlaneseq
          %v316 = vshrl.u32 %v315, 7
          %v317 = vsub.s32 %v314, %v316
          %v318 = vrot.slane %v281, %v317
          %v320 = vunpack.c.l.s4 1966171168
          %v321 = vunpack.c.0.s8 %v320
          %v322 = vlaneseq
          %v323 = vshrl.u32 %v322, 7
          %v324 = vsub.s32 %v321, %v323
          %v325 = vrot.slane %v311, %v324
          %v326 = vcombine.high %v318, %v318
          %v327 = vcombine.high %v325, %v325
          %v329 = vunpack.c.l.s4 1966171168
          %v330 = vunpack.c.0.s8 %v329
          %v331 = vlaneseq
          %v332 = vshrl.u32 %v331, 7
          %v333 = vsub.s32 %v330, %v332
          %v334 = vrot.slane %v318, %v333
          %v336 = vunpack.c.l.s4 1966171168
          %v337 = vunpack.c.0.s8 %v336
          %v338 = vlaneseq
          %v339 = vshrl.u32 %v338, 7
          %v340 = vsub.s32 %v337, %v339
          %v341 = vrot.slane %v325, %v340
          %v343 = vunpack.c.l.s4 1966171168
          %v344 = vunpack.c.0.s8 %v343
          %v345 = vlaneseq
          %v346 = vshrl.u32 %v345, 7
          %v347 = vsub.s32 %v344, %v346
          %v348 = vrot.slane %v326, %v347
          %v350 = vunpack.c.l.s4 1966171168
          %v351 = vunpack.c.0.s8 %v350
          %v352 = vlaneseq
          %v353 = vshrl.u32 %v352, 7
          %v354 = vsub.s32 %v351, %v353
          %v355 = vrot.slane %v327, %v354
          %v356 = vcombine.high %v334, %v334
          %v357 = vcombine.high %v341, %v341
          %v358 = vcombine.high %v348, %v348
          %v359 = vcombine.high %v355, %v355
          %v360 = vcombine.high %v282, %v282
          %v362 = vunpack.c.l.s4 1966171168
          %v363 = vunpack.c.0.s8 %v362
          %v364 = vlaneseq
          %v365 = vshrl.u32 %v364, 7
          %v366 = vsub.s32 %v363, %v365
          %v367 = vrot.slane %v282, %v366
          %v369 = vunpack.c.l.s4 1966171168
          %v370 = vunpack.c.0.s8 %v369
          %v371 = vlaneseq
          %v372 = vshrl.u32 %v371, 7
          %v373 = vsub.s32 %v370, %v372
          %v374 = vrot.slane %v360, %v373
          %v375 = vcombine.high %v367, %v367
          %v376 = vcombine.high %v374, %v374
          %v378 = vunpack.c.l.s4 1966171168
          %v379 = vunpack.c.0.s8 %v378
          %v380 = vlaneseq
          %v381 = vshrl.u32 %v380, 7
          %v382 = vsub.s32 %v379, %v381
          %v383 = vrot.slane %v367, %v382
          %v385 = vunpack.c.l.s4 1966171168
          %v386 = vunpack.c.0.s8 %v385
          %v387 = vlaneseq
          %v388 = vshrl.u32 %v387, 7
          %v389 = vsub.s32 %v386, %v388
          %v390 = vrot.slane %v374, %v389
          %v392 = vunpack.c.l.s4 1966171168
          %v393 = vunpack.c.0.s8 %v392
          %v394 = vlaneseq
          %v395 = vshrl.u32 %v394, 7
          %v396 = vsub.s32 %v393, %v395
          %v397 = vrot.slane %v375, %v396
          %v399 = vunpack.c.l.s4 1966171168
          %v400 = vunpack.c.0.s8 %v399
          %v401 = vlaneseq
          %v402 = vshrl.u32 %v401, 7
          %v403 = vsub.s32 %v400, %v402
          %v404 = vrot.slane %v376, %v403
          %v405 = vcombine.high %v383, %v383
          %v406 = vcombine.high %v390, %v390
          %v407 = vcombine.high %v397, %v397
          %v408 = vcombine.high %v404, %v404
          %v409 = vlaneseq
          %v410 = vshrl.u32 %v409, 7
          %v411 = vsub.s32 0, %v410
          %v412 = vrot.slane %v334, %v411
          %v413 = vlaneseq
          %v414 = vshrl.u32 %v413, 7
          %v415 = vsub.s32 0, %v414
          %v416 = vrot.slane %v348, %v415
          %v417 = vlaneseq
          %v418 = vshrl.u32 %v417, 7
          %v419 = vsub.s32 0, %v418
          %v420 = vrot.slane %v356, %v419
          %v421 = vlaneseq
          %v422 = vshrl.u32 %v421, 7
          %v423 = vsub.s32 0, %v422
          %v424 = vrot.slane %v358, %v423
          %v425 = vlaneseq
          %v426 = vshrl.u32 %v425, 7
          %v427 = vsub.s32 0, %v426
          %v428 = vrot.slane %v341, %v427
          %v429 = vlaneseq
          %v430 = vshrl.u32 %v429, 7
          %v431 = vsub.s32 0, %v430
          %v432 = vrot.slane %v355, %v431
          %v433 = vlaneseq
          %v434 = vshrl.u32 %v433, 7
          %v435 = vsub.s32 0, %v434
          %v436 = vrot.slane %v357, %v435
          %v437 = vlaneseq
          %v438 = vshrl.u32 %v437, 7
          %v439 = vsub.s32 0, %v438
          %v440 = vrot.slane %v359, %v439
          %v441 = vlaneseq
          %v442 = vshrl.u32 %v441, 7
          %v443 = vsub.s32 0, %v442
          %v444 = vrot.slane %v383, %v443
          %v445 = vlaneseq
          %v446 = vshrl.u32 %v445, 7
          %v447 = vsub.s32 0, %v446
          %v448 = vrot.slane %v397, %v447
          %v449 = vlaneseq
          %v450 = vshrl.u32 %v449, 7
          %v451 = vsub.s32 0, %v450
          %v452 = vrot.slane %v405, %v451
          %v453 = vlaneseq
          %v454 = vshrl.u32 %v453, 7
          %v455 = vsub.s32 0, %v454
          %v456 = vrot.slane %v407, %v455
          %v457 = vlaneseq
          %v458 = vshrl.u32 %v457, 7
          %v459 = vsub.s32 0, %v458
          %v460 = vrot.slane %v390, %v459
          %v461 = vlaneseq
          %v462 = vshrl.u32 %v461, 7
          %v463 = vsub.s32 0, %v462
          %v464 = vrot.slane %v404, %v463
          %v465 = vlaneseq
          %v466 = vshrl.u32 %v465, 7
          %v467 = vsub.s32 0, %v466
          %v468 = vrot.slane %v406, %v467
          %v469 = vlaneseq
          %v470 = vshrl.u32 %v469, 7
          %v471 = vsub.s32 0, %v470
          %v472 = vrot.slane %v408, %v471
          %v489 = vmul.f32 %v412, %v307
          %v490 = vmul.f32 %v412, %v308
          %v491 = vmul.f32 %v416, %v307
          %v492 = vmul.f32 %v416, %v308
          %v493 = vmul.f32 %v420, %v307
          %v494 = vmul.f32 %v420, %v308
          %v495 = vmul.f32 %v424, %v307
          %v496 = vmul.f32 %v424, %v308
          %v497 = vmul.f32 %v428, %v307
          %v498 = vmul.f32 %v428, %v308
          %v499 = vmul.f32 %v432, %v307
          %v500 = vmul.f32 %v432, %v308
          %v501 = vmul.f32 %v436, %v307
          %v502 = vmul.f32 %v436, %v308
          %v503 = vmul.f32 %v440, %v307
          %v504 = vmul.f32 %v440, %v308
          %v505 = vmul.f32 %v444, %v307
          %v506 = vmul.f32 %v444, %v308
          %v507 = vmul.f32 %v448, %v307
          %v508 = vmul.f32 %v448, %v308
          %v509 = vmul.f32 %v452, %v307
          %v510 = vmul.f32 %v452, %v308
          %v511 = vmul.f32 %v456, %v307
          %v512 = vmul.f32 %v456, %v308
          %v513 = vmul.f32 %v460, %v307
          %v514 = vmul.f32 %v460, %v308
          %v515 = vmul.f32 %v464, %v307
          %v516 = vmul.f32 %v464, %v308
          %v517 = vmul.f32 %v468, %v307
          %v518 = vmul.f32 %v468, %v308
          %v519 = vmul.f32 %v472, %v307
          %v520 = vmul.f32 %v472, %v308
          %s521 = smul.addr %s231, 4
          %s522 = scalar_lea.vmem %s184, %s521 [#allocation2]
          %v523 = vld [vmem:[%s522] sm:$0xff]
          %v525 = vcombine.high %v523, %v523
          %527 = vmatprep.subr.mxu0 0.0
          %528 = vmatpush1.msra.mxu0 %v489
          %529 = vmatprep.subr.mxu0 0.0
          %530 = vmatpush1.msra.mxu0 %v490
          %531 = vmatprep.subr.mxu0 0.0
          %532 = vmatpush1.msra.mxu0 %v491
          %533 = vmatprep.subr.mxu0 0.0
          %534 = vmatpush1.msra.mxu0 %v492
          %535 = vmatprep.subr.mxu0 0.0
          %536 = vmatpush1.msra.mxu0 %v493
          %537 = vmatprep.subr.mxu0 0.0
          %538 = vmatpush1.msra.mxu0 %v494
          %539 = vmatprep.subr.mxu0 0.0
          %540 = vmatpush1.msra.mxu0 %v495
          %541 = vmatprep.subr.mxu0 0.0
          %542 = vmatpush1.msra.mxu0 %v496
          %543 = vmatprep.subr.mxu0 0.0
          %544 = vmatpush1.msra.mxu0 %v497
          %545 = vmatprep.subr.mxu0 0.0
          %546 = vmatpush1.msra.mxu0 %v498
          %547 = vmatprep.subr.mxu0 0.0
          %548 = vmatpush1.msra.mxu0 %v499
          %549 = vmatprep.subr.mxu0 0.0
          %550 = vmatpush1.msra.mxu0 %v500
          %551 = vmatprep.subr.mxu0 0.0
          %552 = vmatpush1.msra.mxu0 %v501
          %553 = vmatprep.subr.mxu0 0.0
          %554 = vmatpush1.msra.mxu0 %v502
          %555 = vmatprep.subr.mxu0 0.0
          %556 = vmatpush1.msra.mxu0 %v503
          %557 = vmatprep.subr.mxu0 0.0
          %558 = vmatpush1.msra.mxu0 %v504
          %559 = vmatprep.subr.mxu0 0.0
          %560 = vmatpush1.msra.mxu0 %v505
          %561 = vmatprep.subr.mxu0 0.0
          %562 = vmatpush1.msra.mxu0 %v506
          %563 = vmatprep.subr.mxu0 0.0
          %564 = vmatpush1.msra.mxu0 %v507
          %565 = vmatprep.subr.mxu0 0.0
          %566 = vmatpush1.msra.mxu0 %v508
          %567 = vmatprep.subr.mxu0 0.0
          %568 = vmatpush1.msra.mxu0 %v509
          %569 = vmatprep.subr.mxu0 0.0
          %570 = vmatpush1.msra.mxu0 %v510
          %571 = vmatprep.subr.mxu0 0.0
          %572 = vmatpush1.msra.mxu0 %v511
          %573 = vmatprep.subr.mxu0 0.0
          %574 = vmatpush1.msra.mxu0 %v512
          %575 = vmatprep.subr.mxu0 0.0
          %576 = vmatpush1.msra.mxu0 %v513
          %577 = vmatprep.subr.mxu0 0.0
          %578 = vmatpush1.msra.mxu0 %v514
          %579 = vmatprep.subr.mxu0 0.0
          %580 = vmatpush1.msra.mxu0 %v515
          %581 = vmatprep.subr.mxu0 0.0
          %582 = vmatpush1.msra.mxu0 %v516
          %583 = vmatprep.subr.mxu0 0.0
          %584 = vmatpush1.msra.mxu0 %v517
          %585 = vmatprep.subr.mxu0 0.0
          %586 = vmatpush1.msra.mxu0 %v518
          %587 = vmatprep.subr.mxu0 0.0
          %588 = vmatpush1.msra.mxu0 %v519
          %589 = vmatprep.subr.mxu0 0.0
          %590 = vmatpush1.msra.mxu0 %v520
          %591 = vmatprep.mubr.f32.mxu0 %v525
          %592 = vmatmul.mubr.f32.gmra.mrb[0].mxu0 %v523
          %v593 = vpop.f32.mrb[0].mxu0
          %v594 = vadd.f32 0.0, %v593
          %v595 = vpop.f32.mrb[0].mxu0
          %596 = vdwg.mxu0
          %v597 = vadd.f32 %v230, %v594
        $region41: #{tpu_custom_call.1} parent=27 // loop_footer
          %s229 = sadd.s32 1, %s225
        $region42: #{tpu_custom_call.1} parent=27 // loop_footer_branch
          %224 = sbr.rel target = $region38
        $region43: #{tpu_custom_call.1} parent=27 // loop_exit
          _
        %598 = vst [vmem:[%s218] sm:$0xf] %v230
        %s599 = sand.u32 %s98, 1
        %s600 = scalar_lea.sflag [#allocation4], %s599
        %s601 = sand.u32 %s98, 1
        %s602 = smul.addr %s601, 4
        %s603 = scalar_lea.vmem [#allocation7], %s602
        // Predicated region
        $region44: #{tpu_custom_call.1} parent=27 // pred_check
          %p604 = pneg %p108
        $region45: #{tpu_custom_call.1} parent=27 // pred_check_branch
          %606 = sbr.rel (%p604) target = $region47
        $region46: #{tpu_custom_call.1} parent=27 // pred_region
          %s608 = ssub.s32 64, 64
          %609 = vsyncadd %s600, %s608
          %s610 = smul.addr %s26, 2
          %s611 = sadd.s32 %s27, %s610
          %s612 = smul.addr %s611, 64
          %s613 = scalar_lea.hbm %s2, %s612
          %s615 = sshll.u32 %s603, 4
          %s616 = int_to_ptr.vmem [resolvable:$true] %s615
          %618 = dma.vmem_to_hbm [thread:$0]  %s616, 64, %s613, %s600
        $region47: #{tpu_custom_call.1} parent=27 // pred_fallthru
          _
      $region28: #{tpu_custom_call.1} parent=5 // pred_fallthru
        _
      %p619 = scmp.le.s32.totalorder 2, %s17
      // Predicated region
      $region48: #{tpu_custom_call.1} parent=5 // pred_check
        %p620 = pneg %p619
      $region49: #{tpu_custom_call.1} parent=5 // pred_check_branch
        %622 = sbr.rel (%p620) target = $region51
      $region50: #{tpu_custom_call.1} parent=5 // pred_region
        %s623 = ssub.s32 %s17, 2
        // Predicated region
        $region52: #{tpu_custom_call.1} parent=50 // pred_check
          %p624 = pneg %p114
        $region53: #{tpu_custom_call.1} parent=50 // pred_check_branch
          %626 = sbr.rel (%p624) target = $region55
        $region54: #{tpu_custom_call.1} parent=50 // pred_region
          %s627 = sand.u32 %s99, 1
          %s628 = scalar_lea.sflag [#allocation4], %s627
          %s629 = sand.u32 %s99, 1
          %s630 = smul.addr %s629, 4
          %s631 = scalar_lea.vmem [#allocation7], %s630
          %632 = dma.done %s628, 64
        $region55: #{tpu_custom_call.1} parent=50 // pred_fallthru
          _
      $region51: #{tpu_custom_call.1} parent=5 // pred_fallthru
        _
    $region6: #{tpu_custom_call.1} parent=1 // loop_footer
      %s21 = sadd.s32 1, %s17
    $region7: #{tpu_custom_call.1} parent=1 // loop_footer_branch
      %16 = sbr.rel target = $region3
    $region8: #{tpu_custom_call.1} parent=1 // loop_exit
      _
    %633 = vsyncpa [#allocation3], 1
    %s634 = scalar_lea.sflag [#allocation3], 1
    %635 = vsyncpa %s634, 1
    %636 = vsyncpa [#allocation6], 1
    %s637 = scalar_lea.sflag [#allocation6], 1
    %638 = vsyncpa %s637, 1
    %639 = vsyncpa [#allocation4], 1
    %s640 = scalar_lea.sflag [#allocation4], 1
    %641 = vsyncpa %s640, 1

</llo_original>
